<compile_context>
chip_gen: v7x
topology: tpu7x:2x2x1
jax: 0.10.0
libtpu: 0.0.40
codegen_flags: <defaults>
</compile_context>

<pallas_src>
import jax
import jax.numpy as jnp
from jax.experimental import pallas as pl
from jax.experimental.pallas import tpu as pltpu


def _xui_kernel(a_ref, b_ref, o_ref):
    # a_ref / b_ref: (tb, 2K) packed embedding rows.  HBM-bound: the explicit
    # f32 upcast, multiply and cross-lane reduce are free filler on all gens
    # (and v5e's VPU has no bf16 anyway), so keep f32 accumulation.
    a = a_ref[...].astype(jnp.float32)
    b = b_ref[...].astype(jnp.float32)
    o_ref[...] = jnp.sum(a * b, axis=-1, keepdims=True)


def _round_up(x, m):
    return (x + m - 1) // m * m


def _round_down(x, m):
    return (x // m) * m


def egcfv2_forward_packed(a, b, *, tb_max=32768):
    """xui = sum(a * b, axis=-1) for packed rows a=[gu||gut], b=[gi||git].

    a, b: (B, 2K) gathered, pre-packed embeddings (float32 or bfloat16).
    Returns xui: (B,) float32.
    """
    assert a.ndim == 2 and a.shape == b.shape
    B, KP = a.shape
    lane = 128
    itemsize = max(jnp.dtype(a.dtype).itemsize, jnp.dtype(b.dtype).itemsize)

    # --- batch-tile selection ----------------------------------------------
    # Per grid step (double-buffered): 2 input blocks (tb, 2K) + f32 (tb, 1)
    # output.  Keep the working set under ~24 MiB so it fits v7x's smaller
    # VMEM with headroom; v5e/v6e (128 MiB physical) fit trivially.
    budget = 24 * 1024 * 1024
    bytes_per_row = (2 * KP * itemsize + 4) * 2        # inputs + out, 2 buffers
    tb_cap = max(lane, _round_down(budget // bytes_per_row, lane))
    tb = min(max(lane, _round_down(tb_max, lane)), tb_cap, _round_up(B, lane))
    # Guarantee >= 4 (or >= 2) grid steps when the batch allows, so
    # dimension_semantics=("parallel",) can shard across v7x's two TCs.
    for min_steps in (4, 2):
        if B >= min_steps * lane:
            tb = min(tb, max(lane, _round_down(B // min_steps, lane)))
            break
    grid = pl.cdiv(B, tb)   # partial last block: padded reads, masked writes

    vmem_limit = int(bytes_per_row * tb + 6 * 1024 * 1024)

    out = pl.pallas_call(
        _xui_kernel,
        out_shape=jax.ShapeDtypeStruct((B, 1), jnp.float32),
        grid_spec=pltpu.PrefetchScalarGridSpec(
            num_scalar_prefetch=0,
            grid=(grid,),
            in_specs=[pl.BlockSpec((tb, KP), lambda i: (i, 0)),
                      pl.BlockSpec((tb, KP), lambda i: (i, 0))],
            out_specs=pl.BlockSpec((tb, 1), lambda i: (i, 0)),
        ),
        compiler_params=pltpu.CompilerParams(
            dimension_semantics=("parallel",),
            vmem_limit_bytes=vmem_limit,
        ),
    )(a, b)
    return out[:, 0]


def egcfv2_forward(gu, gi, gut, git, **kw):
    """Compatibility wrapper matching the torch forward's 4-tensor signature.

    For performance, pack the embedding *tables* upstream and call
    egcfv2_forward_packed on gathered rows (avoids a per-batch concat pass).
    """
    a = jnp.concatenate([gu, gut], axis=1)
    b = jnp.concatenate([gi, git], axis=1)
    return egcfv2_forward_packed(a, b, **kw)


def _xavier_normal(key, shape):
    fan_in, fan_out = shape
    std = jnp.sqrt(2.0 / (fan_in + fan_out))
    return std * jax.random.normal(key, shape, dtype=jnp.float32)


if __name__ == "__main__":
    # Small deterministic synthetic setup consistent with the module's __init__.
    num_users, num_items, embed_k = 12, 10, 32
    batch = 16  # number of (user, item) interactions scored per forward call

    key = jax.random.PRNGKey(0)
    k_gu, k_gi, k_gut, k_git, k_u, k_i = jax.random.split(key, 6)

    # Deterministic "parameters" standing in for the propagated embeddings
    # (collaborative Gu/Gi and textual Gut/Git), xavier-normal initialized.
    Gu = _xavier_normal(k_gu, (num_users, embed_k))
    Gi = _xavier_normal(k_gi, (num_items, embed_k))
    Gut = _xavier_normal(k_gut, (num_users, embed_k))
    Git = _xavier_normal(k_git, (num_items, embed_k))

    # Upstream table packing (done ONCE, not per batch) + bf16 storage halves
    # the kernel's HBM read traffic; the kernel upcasts to f32 internally.
    Gu_packed = jnp.concatenate([Gu, Gut], axis=1).astype(jnp.bfloat16)
    Gi_packed = jnp.concatenate([Gi, Git], axis=1).astype(jnp.bfloat16)

    # Batch of user/item indices (as in train_step: gu[user], gi[pos], ...).
    user_idx = jax.random.randint(k_u, (batch,), 0, num_users)
    item_idx = jax.random.randint(k_i, (batch,), 0, num_items)

    # Glue: the gather already yields packed (B, 2K) rows.
    a = Gu_packed[user_idx]   # [gu || gut]
    b = Gi_packed[item_idx]   # [gi || git]

    xui = egcfv2_forward_packed(a, b)
    xui = jax.block_until_ready(xui)

    # Reference: the original 4-tensor forward, in f32, on the same
    # (bf16-stored) gathered embeddings.
    gu_r = a[:, :embed_k].astype(jnp.float32)
    gut_r = a[:, embed_k:].astype(jnp.float32)
    gi_r = b[:, :embed_k].astype(jnp.float32)
    git_r = b[:, embed_k:].astype(jnp.float32)
    ref = jnp.sum(gu_r * gi_r, axis=1) + jnp.sum(gut_r * git_r, axis=1)

    assert xui.shape == (batch,)
    assert jnp.allclose(xui, ref, atol=1e-5, rtol=1e-5)

    print("KERNEL_OK")
</pallas_src>

<mosaic_0001>
module attributes {stable_mosaic.version = 11 : i64} {
  func.func @_xui_kernel(%arg0: i32, %arg1: memref<128x64xbf16, #tpu.memory_space<vmem>>, %arg2: memref<128x64xbf16, #tpu.memory_space<vmem>>, %arg3: memref<128x1xf32, #tpu.memory_space<vmem>>) attributes {dimension_semantics = [#tpu.dimension_semantics<parallel>], iteration_bounds = array<i64: 1>, scalar_prefetch = 0 : i64, scratch_operands = 0 : i64, tpu.core_type = #tpu.core_type<tc>, window_params = [{transform_indices = @transform_0, window_bounds = array<i64: 128, 64>}, {transform_indices = @transform_1, window_bounds = array<i64: 128, 64>}, {transform_indices = @transform_2, window_bounds = array<i64: 128, 1>}]} {
    %c0 = arith.constant 0 : index
    %c0_0 = arith.constant 0 : index
    %0 = vector.load %arg1[%c0, %c0_0] : memref<128x64xbf16, #tpu.memory_space<vmem>>, vector<128x64xbf16>
    %1 = arith.extf %0 : vector<128x64xbf16> to vector<128x64xf32>
    %c0_1 = arith.constant 0 : index
    %c0_2 = arith.constant 0 : index
    %2 = vector.load %arg2[%c0_1, %c0_2] : memref<128x64xbf16, #tpu.memory_space<vmem>>, vector<128x64xbf16>
    %3 = arith.extf %2 : vector<128x64xbf16> to vector<128x64xf32>
    %4 = arith.mulf %1, %3 : vector<128x64xf32>
    %cst = arith.constant dense<0.000000e+00> : vector<128xf32>
    %5 = vector.multi_reduction <add>, %4, %cst [1] : vector<128x64xf32> to vector<128xf32>
    %6 = vector.shape_cast %5 : vector<128xf32> to vector<128x1xf32>
    %c0_3 = arith.constant 0 : index
    %c0_4 = arith.constant 0 : index
    %7 = vector.load %arg3[%c0_3, %c0_4] : memref<128x1xf32, #tpu.memory_space<vmem>>, vector<128x1xf32>
    tpu.vector_store %arg3[%c0_3, %c0_4], %6 {strides = array<i32>} : memref<128x1xf32, #tpu.memory_space<vmem>>, vector<128x1xf32>,
    return
  }
  func.func @transform_0(%arg0: i32) -> (i32, i32) {
    %c0_i32 = arith.constant 0 : i32
    %c0_i32_0 = arith.constant 0 : i32
    return %arg0, %c0_i32 : i32, i32
  }
  func.func @transform_1(%arg0: i32) -> (i32, i32) {
    %c0_i32 = arith.constant 0 : i32
    %c0_i32_0 = arith.constant 0 : i32
    return %arg0, %c0_i32 : i32, i32
  }
  func.func @transform_2(%arg0: i32) -> (i32, i32) {
    %c0_i32 = arith.constant 0 : i32
    %c0_i32_0 = arith.constant 0 : i32
    return %arg0, %c0_i32 : i32, i32
  }
}

</mosaic_0001>

<llo_original>
// kernel: tpu_custom_call.1
$region0: #{tpu_custom_call.1}
  #allocation0 [shape = 'u32[]', space=smem, size = 0x4, offset = 0x4, fixed_abs, tag = 'smem constant byte address 0x4 - core index']
  #allocation1 [shape = 'u32[144,128]{1,0:T(1,128)}', space=vmem, size = 0x12000, scoped, tag = 'internal scratch']
  %s0 = inlined_call_operand.hbm [shape: bf16[16,64], index: 0, kind: input, shape index: {}]
  %s1 = inlined_call_operand.hbm [shape: bf16[16,64], index: 1, kind: input, shape index: {}]
  %s2 = inlined_call_operand.vmem [shape: f32[16,1], index: 2, kind: output, shape index: {}]
  %s3 = sld [smem:[#allocation0]]
  $region60: #{tpu_custom_call.1} parent=0
    _
  %s5 = ssub.s32 1, %s3
  %s6 = scalar_select 0, %s5, %s3
  $region1: #{tpu_custom_call.1} parent=0
    #allocation2 [shape = 'u8[32768]{0}', space=vmem, size = 0x8000, scoped, tag = 'input window, operand 0, single buffered']
    #allocation3 [shape = 's32[1]{0}', space=sflag, size = 0x4, scoped, tag = 'scoped memory for tpu_custom_call.1']
    #allocation4 [shape = 'u8[32768]{0}', space=vmem, size = 0x8000, scoped, tag = 'input window, operand 1, single buffered']
    #allocation5 [shape = 's32[1]{0}', space=sflag, size = 0x4, scoped, tag = 'scoped memory for tpu_custom_call.1']
    #allocation6 [shape = 'u8[65536]{0}', space=vmem, size = 0x10000, scoped, tag = 'output window, operand 0, single buffered']
    %7 = vsyncpa [#allocation3], 0
    %8 = vsyncpa [#allocation5], 0
    // Predicated region
    $region2: #{tpu_custom_call.1} parent=1 // pred_check
      _
    $region3: #{tpu_custom_call.1} parent=1 // pred_check_branch
      %10 = sbr.rel (0) target = $region5
    $region4: #{tpu_custom_call.1} parent=1 // pred_region
      %s12 = ssub.s32 1024, 128
      %13 = vsyncadd [#allocation3], %s12
      %s14 = sshll.u32 [#allocation2], 4
      %s15 = int_to_ptr.vmem [resolvable:$true] %s14
      %20 = dma.hbm_to_vmem [thread:$0]  %s0, 128, %s15, [#allocation3], 64, 64, 4
    $region5: #{tpu_custom_call.1} parent=1 // pred_fallthru
      _
    // Predicated region
    $region6: #{tpu_custom_call.1} parent=1 // pred_check
      _
    $region7: #{tpu_custom_call.1} parent=1 // pred_check_branch
      %22 = sbr.rel (0) target = $region9
    $region8: #{tpu_custom_call.1} parent=1 // pred_region
      %s24 = ssub.s32 1024, 128
      %25 = vsyncadd [#allocation5], %s24
      %s26 = sshll.u32 [#allocation4], 4
      %s27 = int_to_ptr.vmem [resolvable:$true] %s26
      %32 = dma.hbm_to_vmem [thread:$0]  %s1, 128, %s27, [#allocation5], 64, 64, 4
    $region9: #{tpu_custom_call.1} parent=1 // pred_fallthru
      _
    // Predicated region
    $region10: #{tpu_custom_call.1} parent=1 // pred_check
      _
    $region11: #{tpu_custom_call.1} parent=1 // pred_check_branch
      %34 = sbr.rel (0) target = $region13
    $region12: #{tpu_custom_call.1} parent=1 // pred_region
      %35 = dma.done [#allocation3], 1024
    $region13: #{tpu_custom_call.1} parent=1 // pred_fallthru
      _
    // Predicated region
    $region14: #{tpu_custom_call.1} parent=1 // pred_check
      _
    $region15: #{tpu_custom_call.1} parent=1 // pred_check_branch
      %37 = sbr.rel (0) target = $region17
    $region16: #{tpu_custom_call.1} parent=1 // pred_region
      %38 = dma.done [#allocation5], 1024
    $region17: #{tpu_custom_call.1} parent=1 // pred_fallthru
      _
    %v39 = vld [vmem:[#allocation2] sm:$0xf]
    %v40 = vld [vmem:[#allocation2 + $0x4] sm:$0xf]
    %v41 = vld [vmem:[#allocation2 + $0x8] sm:$0xf]
    %v42 = vld [vmem:[#allocation2 + $0xc] sm:$0xf]
    %v43 = vld [vmem:[#allocation2 + $0x10] sm:$0xf]
    %v44 = vld [vmem:[#allocation2 + $0x14] sm:$0xf]
    %v45 = vld [vmem:[#allocation2 + $0x18] sm:$0xf]
    %v46 = vld [vmem:[#allocation2 + $0x1c] sm:$0xf]
    %v47 = vld [vmem:[#allocation2 + $0x20] sm:$0xf]
    %v48 = vld [vmem:[#allocation2 + $0x24] sm:$0xf]
    %v49 = vld [vmem:[#allocation2 + $0x28] sm:$0xf]
    %v50 = vld [vmem:[#allocation2 + $0x2c] sm:$0xf]
    %v51 = vld [vmem:[#allocation2 + $0x30] sm:$0xf]
    %v52 = vld [vmem:[#allocation2 + $0x34] sm:$0xf]
    %v53 = vld [vmem:[#allocation2 + $0x38] sm:$0xf]
    %v54 = vld [vmem:[#allocation2 + $0x3c] sm:$0xf]
    %v55 = vunpack.c.l.bf16 %v39
    %v56 = vunpack.c.l.bf16 %v40
    %v57 = vunpack.c.l.bf16 %v41
    %v58 = vunpack.c.l.bf16 %v42
    %v59 = vunpack.c.l.bf16 %v43
    %v60 = vunpack.c.l.bf16 %v44
    %v61 = vunpack.c.l.bf16 %v45
    %v62 = vunpack.c.l.bf16 %v46
    %v63 = vunpack.c.l.bf16 %v47
    %v64 = vunpack.c.l.bf16 %v48
    %v65 = vunpack.c.l.bf16 %v49
    %v66 = vunpack.c.l.bf16 %v50
    %v67 = vunpack.c.l.bf16 %v51
    %v68 = vunpack.c.l.bf16 %v52
    %v69 = vunpack.c.l.bf16 %v53
    %v70 = vunpack.c.l.bf16 %v54
    %v71 = vld [vmem:[#allocation4] sm:$0xf]
    %v72 = vld [vmem:[#allocation4 + $0x4] sm:$0xf]
    %v73 = vld [vmem:[#allocation4 + $0x8] sm:$0xf]
    %v74 = vld [vmem:[#allocation4 + $0xc] sm:$0xf]
    %v75 = vld [vmem:[#allocation4 + $0x10] sm:$0xf]
    %v76 = vld [vmem:[#allocation4 + $0x14] sm:$0xf]
    %v77 = vld [vmem:[#allocation4 + $0x18] sm:$0xf]
    %v78 = vld [vmem:[#allocation4 + $0x1c] sm:$0xf]
    %v79 = vld [vmem:[#allocation4 + $0x20] sm:$0xf]
    %v80 = vld [vmem:[#allocation4 + $0x24] sm:$0xf]
    %v81 = vld [vmem:[#allocation4 + $0x28] sm:$0xf]
    %v82 = vld [vmem:[#allocation4 + $0x2c] sm:$0xf]
    %v83 = vld [vmem:[#allocation4 + $0x30] sm:$0xf]
    %v84 = vld [vmem:[#allocation4 + $0x34] sm:$0xf]
    %v85 = vld [vmem:[#allocation4 + $0x38] sm:$0xf]
    %v86 = vld [vmem:[#allocation4 + $0x3c] sm:$0xf]
    %v87 = vunpack.c.l.bf16 %v71
    %v88 = vunpack.c.l.bf16 %v72
    %v89 = vunpack.c.l.bf16 %v73
    %v90 = vunpack.c.l.bf16 %v74
    %v91 = vunpack.c.l.bf16 %v75
    %v92 = vunpack.c.l.bf16 %v76
    %v93 = vunpack.c.l.bf16 %v77
    %v94 = vunpack.c.l.bf16 %v78
    %v95 = vunpack.c.l.bf16 %v79
    %v96 = vunpack.c.l.bf16 %v80
    %v97 = vunpack.c.l.bf16 %v81
    %v98 = vunpack.c.l.bf16 %v82
    %v99 = vunpack.c.l.bf16 %v83
    %v100 = vunpack.c.l.bf16 %v84
    %v101 = vunpack.c.l.bf16 %v85
    %v102 = vunpack.c.l.bf16 %v86
    %v103 = vmul.f32 %v55, %v87
    %v104 = vmul.f32 %v56, %v88
    %v105 = vmul.f32 %v57, %v89
    %v106 = vmul.f32 %v58, %v90
    %v107 = vmul.f32 %v59, %v91
    %v108 = vmul.f32 %v60, %v92
    %v109 = vmul.f32 %v61, %v93
    %v110 = vmul.f32 %v62, %v94
    %v111 = vmul.f32 %v63, %v95
    %v112 = vmul.f32 %v64, %v96
    %v113 = vmul.f32 %v65, %v97
    %v114 = vmul.f32 %v66, %v98
    %v115 = vmul.f32 %v67, %v99
    %v116 = vmul.f32 %v68, %v100
    %v117 = vmul.f32 %v69, %v101
    %v118 = vmul.f32 %v70, %v102
    %vm119 = vcmask 523264
    %v120 = vsel %vm119, %v103, 0.0
    %121 = vadd.xlane.f32.xlu0 %v120
    %v122 = vpop.xlane.xlu0 %121
    %v123 = vsel %vm119, %v104, 0.0
    %124 = vadd.xlane.f32.xlu0 %v123
    %v125 = vpop.xlane.xlu0 %124
    %v126 = vsel %vm119, %v105, 0.0
    %127 = vadd.xlane.f32.xlu0 %v126
    %v128 = vpop.xlane.xlu0 %127
    %v129 = vsel %vm119, %v106, 0.0
    %130 = vadd.xlane.f32.xlu0 %v129
    %v131 = vpop.xlane.xlu0 %130
    %v132 = vsel %vm119, %v107, 0.0
    %133 = vadd.xlane.f32.xlu0 %v132
    %v134 = vpop.xlane.xlu0 %133
    %v135 = vsel %vm119, %v108, 0.0
    %136 = vadd.xlane.f32.xlu0 %v135
    %v137 = vpop.xlane.xlu0 %136
    %v138 = vsel %vm119, %v109, 0.0
    %139 = vadd.xlane.f32.xlu0 %v138
    %v140 = vpop.xlane.xlu0 %139
    %v141 = vsel %vm119, %v110, 0.0
    %142 = vadd.xlane.f32.xlu0 %v141
    %v143 = vpop.xlane.xlu0 %142
    %v144 = vsel %vm119, %v111, 0.0
    %145 = vadd.xlane.f32.xlu0 %v144
    %v146 = vpop.xlane.xlu0 %145
    %v147 = vsel %vm119, %v112, 0.0
    %148 = vadd.xlane.f32.xlu0 %v147
    %v149 = vpop.xlane.xlu0 %148
    %v150 = vsel %vm119, %v113, 0.0
    %151 = vadd.xlane.f32.xlu0 %v150
    %v152 = vpop.xlane.xlu0 %151
    %v153 = vsel %vm119, %v114, 0.0
    %154 = vadd.xlane.f32.xlu0 %v153
    %v155 = vpop.xlane.xlu0 %154
    %v156 = vsel %vm119, %v115, 0.0
    %157 = vadd.xlane.f32.xlu0 %v156
    %v158 = vpop.xlane.xlu0 %157
    %v159 = vsel %vm119, %v116, 0.0
    %160 = vadd.xlane.f32.xlu0 %v159
    %v161 = vpop.xlane.xlu0 %160
    %v162 = vsel %vm119, %v117, 0.0
    %163 = vadd.xlane.f32.xlu0 %v162
    %v164 = vpop.xlane.xlu0 %163
    %v165 = vsel %vm119, %v118, 0.0
    %166 = vadd.xlane.f32.xlu0 %v165
    %v167 = vpop.xlane.xlu0 %166
    %vm168 = vcmask 7168
    %169 = vst.msk [vmem:[#allocation6] sm:$0xff] %vm168, %v122
    %170 = vst.msk [vmem:[#allocation6 + $0x8] sm:$0xff] %vm168, %v125
    %171 = vst.msk [vmem:[#allocation6 + $0x10] sm:$0xff] %vm168, %v128
    %172 = vst.msk [vmem:[#allocation6 + $0x18] sm:$0xff] %vm168, %v131
    %173 = vst.msk [vmem:[#allocation6 + $0x20] sm:$0xff] %vm168, %v134
    %174 = vst.msk [vmem:[#allocation6 + $0x28] sm:$0xff] %vm168, %v137
    %175 = vst.msk [vmem:[#allocation6 + $0x30] sm:$0xff] %vm168, %v140
    %176 = vst.msk [vmem:[#allocation6 + $0x38] sm:$0xff] %vm168, %v143
    %177 = vst.msk [vmem:[#allocation6 + $0x40] sm:$0xff] %vm168, %v146
    %178 = vst.msk [vmem:[#allocation6 + $0x48] sm:$0xff] %vm168, %v149
    %179 = vst.msk [vmem:[#allocation6 + $0x50] sm:$0xff] %vm168, %v152
    %180 = vst.msk [vmem:[#allocation6 + $0x58] sm:$0xff] %vm168, %v155
    %181 = vst.msk [vmem:[#allocation6 + $0x60] sm:$0xff] %vm168, %v158
    %182 = vst.msk [vmem:[#allocation6 + $0x68] sm:$0xff] %vm168, %v161
    %183 = vst.msk [vmem:[#allocation6 + $0x70] sm:$0xff] %vm168, %v164
    %184 = vst.msk [vmem:[#allocation6 + $0x78] sm:$0xff] %vm168, %v167
    // Predicated region
    $region18: #{tpu_custom_call.1} parent=1 // pred_check
      _
    $region19: #{tpu_custom_call.1} parent=1 // pred_check_branch
      %186 = sbr.rel (0) target = $region21
    $region20: #{tpu_custom_call.1} parent=1 // pred_region
      // Predicated region
      $region22: #{tpu_custom_call.1} parent=20 // pred_check
        _
      $region23: #{tpu_custom_call.1} parent=20 // pred_check_branch
        %188 = sbr.rel (0) target = $region25
      $region24: #{tpu_custom_call.1} parent=20 // pred_region
        // Predicated region
        $region26: #{tpu_custom_call.1} parent=24 // pred_check
          _
        $region27: #{tpu_custom_call.1} parent=24 // pred_check_branch
          %190 = sbr.rel (0) target = $region29
        $region28: #{tpu_custom_call.1} parent=24 // pred_region
          // Predicated region
          $region41: #{tpu_custom_call.1} parent=28 // pred_check
            _
          $region42: #{tpu_custom_call.1} parent=28 // pred_check_branch
            %207 = sbr.rel (0) target = $region44
          $region43: #{tpu_custom_call.1} parent=28 // pred_region
            loop: start=0, step=1, limit=1
            $region45: #{tpu_custom_call.1} parent=43 // loop_pre_header
              _
            $region46: #{tpu_custom_call.1} parent=43 // loop_header
              %s209 = sphi 0, %s213
              %p210 = scmp.ge.s32.totalorder %s209, 1
              %s214 = sphi [#allocation6], [#allocation6]
              %s215 = sphi %s2, %s2
            $region47: #{tpu_custom_call.1} parent=43 // loop_header_branch
              %212 = sbr.rel (%p210) target = $region51
            $region48: #{tpu_custom_call.1} parent=43 // loop_body
              %v216 = vld [vmem:[%s214] sm:$0xff]
              %217 = vst [vmem:[%s215] sm:$0xff] %v216
              %v218 = vld [vmem:[%s214 + $0x8] sm:$0xff]
              %219 = vst [vmem:[%s215 + $0x8] sm:$0xff] %v218
            $region49: #{tpu_custom_call.1} parent=43 // loop_footer
              %s213 = sadd.s32 1, %s209
            $region50: #{tpu_custom_call.1} parent=43 // loop_footer_branch
              %208 = sbr.rel target = $region46
            $region51: #{tpu_custom_call.1} parent=43 // loop_exit
              _
          $region44: #{tpu_custom_call.1} parent=28 // pred_fallthru
            _
          // Predicated region
          $region52: #{tpu_custom_call.1} parent=28 // pred_check
            _
          $region53: #{tpu_custom_call.1} parent=28 // pred_check_branch
            %221 = sbr.rel target = $region55
          $region54: #{tpu_custom_call.1} parent=28 // pred_region
            _
          $region55: #{tpu_custom_call.1} parent=28 // pred_fallthru
            _
        $region29: #{tpu_custom_call.1} parent=24 // pred_fallthru
          _
        // Predicated region
        $region30: #{tpu_custom_call.1} parent=24 // pred_check
          _
        $region31: #{tpu_custom_call.1} parent=24 // pred_check_branch
          %192 = sbr.rel target = $region33
        $region32: #{tpu_custom_call.1} parent=24 // pred_region
          loop: start=0, step=1, limit=1
          $region34: #{tpu_custom_call.1} parent=32 // loop_pre_header
            _
          $region35: #{tpu_custom_call.1} parent=32 // loop_header
            %s195 = sphi 0, %s199
            %p196 = scmp.ge.s32.totalorder %s195, 1
            %s200 = sphi [#allocation6], [#allocation6]
            %s201 = sphi %s2, %s2
          $region36: #{tpu_custom_call.1} parent=32 // loop_header_branch
            %198 = sbr.rel (%p196) target = $region40
          $region37: #{tpu_custom_call.1} parent=32 // loop_body
            %v202 = vld [vmem:[%s200] sm:$0xff]
            %203 = vst [vmem:[%s201] sm:$0xff] %v202
            %v204 = vld [vmem:[%s200 + $0x8] sm:$0xff]
            %205 = vst [vmem:[%s201 + $0x8] sm:$0xff] %v204
          $region38: #{tpu_custom_call.1} parent=32 // loop_footer
            %s199 = sadd.s32 1, %s195
          $region39: #{tpu_custom_call.1} parent=32 // loop_footer_branch
            %194 = sbr.rel target = $region35
          $region40: #{tpu_custom_call.1} parent=32 // loop_exit
            _
        $region33: #{tpu_custom_call.1} parent=24 // pred_fallthru
          _
      $region25: #{tpu_custom_call.1} parent=20 // pred_fallthru
        _
      %222 = vnop
    $region21: #{tpu_custom_call.1} parent=1 // pred_fallthru
      _
    // Predicated region
    $region56: #{tpu_custom_call.1} parent=1 // pred_check
      _
    $region57: #{tpu_custom_call.1} parent=1 // pred_check_branch
      %224 = sbr.rel (0) target = $region59
    $region58: #{tpu_custom_call.1} parent=1 // pred_region
      _
    $region59: #{tpu_custom_call.1} parent=1 // pred_fallthru
      _
    %225 = vsyncpa [#allocation3], 1
    %226 = vsyncpa [#allocation5], 1

</llo_original>
